<compile_context>
chip_gen: v5e
topology: v5e:2x2
jax: 0.10.0
libtpu: 0.0.40
codegen_flags: <defaults>
</compile_context>

<pallas_src>
import functools

import jax
import jax.numpy as jnp
import numpy as np
from jax.experimental import pallas as pl
from jax.experimental.pallas import tpu as pltpu

# (dh, dw) source offsets per conv branch (see derivation above).
_SHIFTS = ((1, 1), (1, 0), (1, -1), (0, -1), (-1, -1))


def _sdc_kernel(x_ref, w_ref, m_ref, o_ref, *, W, hw_pad, group):
    # x_ref: (1, Cin, HWp)          one batch element, spatial flattened (lanes)
    # w_ref: (Cout, 5*group)        augmented weights (bias in the validity column)
    # m_ref: (5, HWp)               per-branch validity masks (0/1, compute dtype)
    # o_ref: (1, Cout, HWp)
    cin = x_ref.shape[1]
    pad_rows = group - cin  # >= 1; first pad row is the validity/bias row

    x = x_ref[0]  # (Cin, HWp)

    blocks = []
    for k, (dh, dw) in enumerate(_SHIFTS):
        s = dh * W + dw
        # shifted[i] = x[i + s] (wrapped positions are always masked).
        xs = pltpu.roll(x, shift=(-s) % hw_pad, axis=1)       # (Cin, HWp) XLU
        mk = m_ref[k:k + 1, :]                                 # (1, HWp)
        blocks.append(xs * mk)                                 # masked shifted input
        blocks.append(jnp.broadcast_to(mk, (pad_rows, hw_pad)))  # validity (+ pad) rows
    x_cat = jnp.concatenate(blocks, axis=0)                    # (5*group, HWp)

    # Single fused MXU pass: all branches, shifts, masks and biases in one matmul.
    y = jnp.dot(w_ref[...], x_cat, preferred_element_type=jnp.float32)  # (Cout, HWp)

    # Single lane-dense store of the whole output block.
    o_ref[0] = y.astype(o_ref.dtype)


@functools.partial(jax.jit, static_argnames=("compute_dtype",))
def sdc_conv2d_1x1s_3_lt2(x_nchw, weights, biases, *, compute_dtype=None):
    """SDCconv2d1x1s_3_Lt2 forward.

    x_nchw:  (N, Cin, H, W)
    weights: (5, Cout, Cin)   -- torch Conv2d weight (Cout, Cin, 1, 1) squeezed
    biases:  (5, Cout)
    compute_dtype: optional matmul-input dtype (e.g. jnp.bfloat16); f32 accumulation
                   and f32 output are kept either way.
    returns: (N, Cout, H, W)
    """
    N, Cin, H, W = x_nchw.shape
    n_br, Cout, _ = weights.shape
    HW = H * W
    HWp = ((HW + 127) // 128) * 128  # lane-dense spatial axis (multiple of 128)

    cdt = jnp.dtype(compute_dtype) if compute_dtype is not None else jnp.dtype(x_nchw.dtype)
    sub = max(8, 32 // cdt.itemsize)                 # sublane packing for cdt
    group = ((Cin + 1 + sub - 1) // sub) * sub       # per-branch row group, tile aligned

    # --- input: flatten spatial (free, stays NCHW), pad lanes, cast ---
    x_flat = x_nchw.reshape(N, Cin, HW)
    if HWp != HW:
        x_flat = jnp.pad(x_flat, ((0, 0), (0, 0), (0, HWp - HW)))
    x_flat = x_flat.astype(cdt)

    # --- augmented weights: per-branch [W_k | b_k | 0...], branch-major columns ---
    per_branch = jnp.concatenate([weights, biases[:, :, None]], axis=2)   # (5, Cout, Cin+1)
    per_branch = jnp.pad(per_branch, ((0, 0), (0, 0), (0, group - (Cin + 1))))
    w_aug = jnp.transpose(per_branch, (1, 0, 2)).reshape(Cout, n_br * group).astype(cdt)

    # --- per-branch validity masks over the padded flattened spatial axis ---
    idx = jnp.arange(HWp, dtype=jnp.int32)
    hh = idx // W
    ww = idx - hh * W
    in_img = idx < HW
    rows = []
    for dh, dw in _SHIFTS:
        v = in_img
        if dh == 1:
            v = v & (hh < H - 1)
        elif dh == -1:
            v = v & (hh >= 1)
        if dw == 1:
            v = v & (ww < W - 1)
        elif dw == -1:
            v = v & (ww >= 1)
        rows.append(v)
    masks = jnp.stack(rows, axis=0).astype(cdt)                           # (5, HWp)

    kernel = functools.partial(_sdc_kernel, W=W, hw_pad=HWp, group=group)

    out_itemsize = jnp.dtype(x_nchw.dtype).itemsize
    cost = pl.CostEstimate(
        flops=2 * N * Cout * n_br * group * HWp,
        transcendentals=0,
        bytes_accessed=N * HWp * (Cin * cdt.itemsize + Cout * out_itemsize)
        + w_aug.size * cdt.itemsize + masks.size * cdt.itemsize,
    )

    out_flat = pl.pallas_call(
        kernel,
        out_shape=jax.ShapeDtypeStruct((N, Cout, HWp), x_nchw.dtype),
        grid_spec=pltpu.PrefetchScalarGridSpec(
            num_scalar_prefetch=0,
            grid=(N,),
            in_specs=[
                pl.BlockSpec((1, Cin, HWp), lambda n: (n, 0, 0)),
                # Tiny, reused every step: whole-array VMEM residents,
                # kept out of the per-step pipelined DMA path.
                pl.BlockSpec(memory_space=pltpu.MemorySpace.VMEM),
                pl.BlockSpec(memory_space=pltpu.MemorySpace.VMEM),
            ],
            out_specs=pl.BlockSpec((1, Cout, HWp), lambda n: (n, 0, 0)),
        ),
        compiler_params=pltpu.CompilerParams(
            dimension_semantics=("parallel",),
        ),
        cost_estimate=cost,
    )(x_flat, w_aug, masks)

    out = out_flat[:, :, :HW] if HWp != HW else out_flat
    return out.reshape(N, Cout, H, W)


def _reference_nchw(x_nchw, weights, biases):
    """Pure-JAX reference mirroring the torch module (pad lists are [Wl,Wr,Ht,Hb])."""
    pads = [
        ((0, 0), (0, 0), (0, 2), (0, 2)),  # y1_1
        ((0, 0), (0, 0), (0, 2), (1, 1)),  # y1_2
        ((0, 0), (0, 0), (0, 2), (2, 0)),  # y1_3
        ((0, 0), (0, 0), (1, 1), (2, 0)),  # y1_4
        ((0, 0), (0, 0), (2, 0), (2, 0)),  # y1_5
    ]
    total = 0.0
    for k in range(5):
        # weights[k] is (Cout, Cin) -- torch layout.
        y = jnp.einsum("nchw,dc->ndhw", x_nchw, weights[k])
        y = y + biases[k][None, :, None, None]
        total = total + jnp.pad(y, pads[k])
    return total[:, :, 1:-1, 1:-1]


if __name__ == "__main__":
    key = jax.random.PRNGKey(0)
    N, Cin, Cout, H, W = 2, 4, 8, 16, 16

    kx, kw, kb = jax.random.split(key, 3)
    x = jax.random.normal(kx, (N, Cin, H, W), dtype=jnp.float32)
    # Synthetic parameters in torch-native layout: Conv2d(Cin, Cout, 1) weight
    # (Cout, Cin, 1, 1) -> (Cout, Cin); bias -> (Cout,).
    weights = 0.1 * jax.random.normal(kw, (5, Cout, Cin), dtype=jnp.float32)
    biases = 0.05 * jax.random.normal(kb, (5, Cout), dtype=jnp.float32)

    ref = jax.block_until_ready(_reference_nchw(x, weights, biases))

    # Exact-semantics f32 path.
    out = jax.block_until_ready(sdc_conv2d_1x1s_3_lt2(x, weights, biases))
    assert out.shape == (N, Cout, H, W), out.shape
    if not np.allclose(np.asarray(out), np.asarray(ref), atol=1e-4, rtol=1e-4):
        raise AssertionError("Pallas kernel (f32) output mismatch vs JAX reference")

    # bf16-MXU path (v6e/v7x HBM-traffic optimization); f32 accumulation/output.
    out_bf16 = jax.block_until_ready(
        sdc_conv2d_1x1s_3_lt2(x, weights, biases, compute_dtype=jnp.bfloat16))
    if not np.allclose(np.asarray(out_bf16), np.asarray(ref), atol=1e-1, rtol=1e-1):
        raise AssertionError("Pallas kernel (bf16 compute) output mismatch vs JAX reference")

    print("KERNEL_OK")
</pallas_src>

<mosaic_0001>
module attributes {stable_mosaic.version = 11 : i64} {
  func.func @_sdc_kernel(%arg0: i32, %arg1: memref<1x4x256xf32, #tpu.memory_space<vmem>>, %arg2: memref<8x40xf32, #tpu.memory_space<vmem>>, %arg3: memref<5x256xf32, #tpu.memory_space<vmem>>, %arg4: memref<1x8x256xf32, #tpu.memory_space<vmem>>) attributes {dimension_semantics = [#tpu.dimension_semantics<parallel>], iteration_bounds = array<i64: 2>, scalar_prefetch = 0 : i64, scratch_operands = 0 : i64, tpu.core_type = #tpu.core_type<tc>, window_params = [{transform_indices = @transform_0, window_bounds = array<i64: 1, 4, 256>}, {pipeline_mode = #tpu.pipeline_mode<synchronous>, transform_indices = @transform_1, window_bounds = array<i64: 8, 40>}, {pipeline_mode = #tpu.pipeline_mode<synchronous>, transform_indices = @transform_2, window_bounds = array<i64: 5, 256>}, {transform_indices = @transform_3, window_bounds = array<i64: 1, 8, 256>}]} {
    %c0 = arith.constant 0 : index
    %c0_0 = arith.constant 0 : index
    %c0_1 = arith.constant 0 : index
    %0 = vector.load %arg1[%c0, %c0_0, %c0_1] : memref<1x4x256xf32, #tpu.memory_space<vmem>>, vector<1x4x256xf32>
    %1 = vector.shape_cast %0 : vector<1x4x256xf32> to vector<4x256xf32>
    %c239_i32 = arith.constant 239 : i32
    %2 = tpu.dynamic_rotate %1 by %c239_i32 dim 1 : vector<4x256xf32>, i32 -> vector<4x256xf32>
    %c0_2 = arith.constant 0 : index
    %c0_3 = arith.constant 0 : index
    %3 = vector.load %arg3[%c0_2, %c0_3] : memref<5x256xf32, #tpu.memory_space<vmem>>, vector<1x256xf32>
    %4 = vector.broadcast %3 : vector<1x256xf32> to vector<4x256xf32>
    %5 = arith.mulf %2, %4 : vector<4x256xf32>
    %6 = vector.shape_cast %3 : vector<1x256xf32> to vector<1x256xf32>
    %7 = vector.broadcast %6 : vector<1x256xf32> to vector<4x256xf32>
    %c240_i32 = arith.constant 240 : i32
    %8 = tpu.dynamic_rotate %1 by %c240_i32 dim 1 : vector<4x256xf32>, i32 -> vector<4x256xf32>
    %c1 = arith.constant 1 : index
    %c0_4 = arith.constant 0 : index
    %9 = vector.load %arg3[%c1, %c0_4] : memref<5x256xf32, #tpu.memory_space<vmem>>, vector<1x256xf32>
    %10 = vector.broadcast %9 : vector<1x256xf32> to vector<4x256xf32>
    %11 = arith.mulf %8, %10 : vector<4x256xf32>
    %12 = vector.shape_cast %9 : vector<1x256xf32> to vector<1x256xf32>
    %13 = vector.broadcast %12 : vector<1x256xf32> to vector<4x256xf32>
    %c241_i32 = arith.constant 241 : i32
    %14 = tpu.dynamic_rotate %1 by %c241_i32 dim 1 : vector<4x256xf32>, i32 -> vector<4x256xf32>
    %c2 = arith.constant 2 : index
    %c0_5 = arith.constant 0 : index
    %15 = vector.load %arg3[%c2, %c0_5] : memref<5x256xf32, #tpu.memory_space<vmem>>, vector<1x256xf32>
    %16 = vector.broadcast %15 : vector<1x256xf32> to vector<4x256xf32>
    %17 = arith.mulf %14, %16 : vector<4x256xf32>
    %18 = vector.shape_cast %15 : vector<1x256xf32> to vector<1x256xf32>
    %19 = vector.broadcast %18 : vector<1x256xf32> to vector<4x256xf32>
    %c1_i32 = arith.constant 1 : i32
    %20 = tpu.dynamic_rotate %1 by %c1_i32 dim 1 : vector<4x256xf32>, i32 -> vector<4x256xf32>
    %c3 = arith.constant 3 : index
    %c0_6 = arith.constant 0 : index
    %21 = vector.load %arg3[%c3, %c0_6] : memref<5x256xf32, #tpu.memory_space<vmem>>, vector<1x256xf32>
    %22 = vector.broadcast %21 : vector<1x256xf32> to vector<4x256xf32>
    %23 = arith.mulf %20, %22 : vector<4x256xf32>
    %24 = vector.shape_cast %21 : vector<1x256xf32> to vector<1x256xf32>
    %25 = vector.broadcast %24 : vector<1x256xf32> to vector<4x256xf32>
    %c17_i32 = arith.constant 17 : i32
    %26 = tpu.dynamic_rotate %1 by %c17_i32 dim 1 : vector<4x256xf32>, i32 -> vector<4x256xf32>
    %c4 = arith.constant 4 : index
    %c0_7 = arith.constant 0 : index
    %27 = vector.load %arg3[%c4, %c0_7] : memref<5x256xf32, #tpu.memory_space<vmem>>, vector<1x256xf32>
    %28 = vector.broadcast %27 : vector<1x256xf32> to vector<4x256xf32>
    %29 = arith.mulf %26, %28 : vector<4x256xf32>
    %30 = vector.shape_cast %27 : vector<1x256xf32> to vector<1x256xf32>
    %31 = vector.broadcast %30 : vector<1x256xf32> to vector<4x256xf32>
    %32 = tpu.concatenate %5, %7, %11, %13, %17, %19, %23, %25, %29, %31 in 0 : vector<4x256xf32>, vector<4x256xf32>, vector<4x256xf32>, vector<4x256xf32>, vector<4x256xf32>, vector<4x256xf32>, vector<4x256xf32>, vector<4x256xf32>, vector<4x256xf32>, vector<4x256xf32> -> vector<40x256xf32>
    %c0_8 = arith.constant 0 : index
    %c0_9 = arith.constant 0 : index
    %33 = vector.load %arg2[%c0_8, %c0_9] : memref<8x40xf32, #tpu.memory_space<vmem>>, vector<8x40xf32>
    %cst = arith.constant dense<0.000000e+00> : vector<8x256xf32>
    %34 = tpu.matmul %33, %32, %cst {dimension_numbers = #tpu.dot_dimension_numbers<[1], [0], [0], [1], [0, 0, 1, 1], [], []>} : vector<8x40xf32>, vector<40x256xf32>, vector<8x256xf32> -> vector<8x256xf32>
    %c0_10 = arith.constant 0 : index
    %c0_11 = arith.constant 0 : index
    %c0_12 = arith.constant 0 : index
    %35 = vector.load %arg4[%c0_10, %c0_11, %c0_12] : memref<1x8x256xf32, #tpu.memory_space<vmem>>, vector<1x8x256xf32>
    %36 = vector.shape_cast %35 : vector<1x8x256xf32> to vector<8x256xf32>
    %37 = vector.shape_cast %34 : vector<8x256xf32> to vector<1x8x256xf32>
    tpu.vector_store %arg4[%c0_10, %c0_11, %c0_12], %37 {strides = array<i32>} : memref<1x8x256xf32, #tpu.memory_space<vmem>>, vector<1x8x256xf32>,
    return
  }
  func.func @transform_0(%arg0: i32) -> (i32, i32, i32) {
    %c0_i32 = arith.constant 0 : i32
    %c0_i32_0 = arith.constant 0 : i32
    %c0_i32_1 = arith.constant 0 : i32
    return %arg0, %c0_i32, %c0_i32_0 : i32, i32, i32
  }
  func.func @transform_1(%arg0: i32) -> (i32, i32) {
    %c0_i32 = arith.constant 0 : i32
    %c0_i32_0 = arith.constant 0 : i32
    %c0_i32_1 = arith.constant 0 : i32
    return %c0_i32, %c0_i32_0 : i32, i32
  }
  func.func @transform_2(%arg0: i32) -> (i32, i32) {
    %c0_i32 = arith.constant 0 : i32
    %c0_i32_0 = arith.constant 0 : i32
    %c0_i32_1 = arith.constant 0 : i32
    return %c0_i32, %c0_i32_0 : i32, i32
  }
  func.func @transform_3(%arg0: i32) -> (i32, i32, i32) {
    %c0_i32 = arith.constant 0 : i32
    %c0_i32_0 = arith.constant 0 : i32
    %c0_i32_1 = arith.constant 0 : i32
    return %arg0, %c0_i32, %c0_i32_0 : i32, i32, i32
  }
}

</mosaic_0001>

<llo_original>
// kernel: sdc_conv2d_1x1s_3_lt2.1
$region0: #{sdc_conv2d_1x1s_3_lt2.1}
  #allocation0 [shape = 'u32[]', space=smem, size = 0x4, offset = 0x4, fixed_abs, tag = 'smem constant byte address 0x4 - core index']
  #allocation1 [shape = 'u32[72,128]{1,0:T(1,128)}', space=vmem, size = 0x9000, scoped, tag = 'internal scratch']
  %s0 = inlined_call_operand.vmem [shape: f32[2,4,256], index: 0, kind: input, shape index: {}]
  %s1 = inlined_call_operand.vmem [shape: f32[8,40], index: 1, kind: input, shape index: {}]
  %s2 = inlined_call_operand.vmem [shape: f32[5,256], index: 2, kind: input, shape index: {}]
  %s3 = inlined_call_operand.vmem [shape: f32[2,8,256], index: 3, kind: output, shape index: {}]
  %s4 = sld [smem:[#allocation0]]
  $region45: #{sdc_conv2d_1x1s_3_lt2.1} parent=0
    _
  %s6 = ssub.s32 1, %s4
  %s7 = scalar_select 0, %s6, %s4
  loop: start=0, step=1, limit=4
  $region2: #{sdc_conv2d_1x1s_3_lt2.1} parent=0 // loop_pre_header
    _
  $region3: #{sdc_conv2d_1x1s_3_lt2.1} parent=0 // loop_header
    %s9 = sphi 0, %s13
    %p10 = scmp.ge.s32.totalorder %s9, 4
    %s19 = sphi 0, %s21
    %s22 = sphi 0, %s19
    %s23 = sphi 0, %s22
    %s39 = sphi 0, %s23
    %s43 = sphi 0, %s43
    %s45 = sphi 0, %s43
    %s46 = sphi 0, %s45
    %s60 = sphi 0, %s46
    %s64 = sphi 0, %s64
    %s66 = sphi 0, %s64
    %s67 = sphi 0, %s66
    %s81 = sphi 0, %s67
    %s87 = sphi 0, %s89
    %s90 = sphi 0, %s87
    %s91 = sphi 0, %s90
    %s107 = sphi 0, %s91
  $region4: #{sdc_conv2d_1x1s_3_lt2.1} parent=0 // loop_header_branch
    %12 = sbr.rel (%p10) target = $region8
  $region5: #{sdc_conv2d_1x1s_3_lt2.1} parent=0 // loop_body
    %s14 = ssub.s32 %s9, 1
    %s15 = ssub.s32 %s9, 2
    %s16 = sadd.s32 %s9, 1
    %s17 = ssub.s32 %s9, %s16
    %p18 = scmp.eq.s32.totalorder %s17, 0
    %s20 = sadd.s32 %s19, 1
    %s21 = scalar_select %p18, %s19, %s20
    %p24 = pneg %p18
    %p25 = scmp.eq.s32.totalorder %s9, 1
    %p26 = por %p24, %p25
    %p27 = scmp.ne.s32.totalorder %s19, %s22
    %p28 = scmp.eq.s32.totalorder %s9, 0
    %p29 = por %p27, %p28
    %p30 = scmp.ne.s32.totalorder %s19, %s22
    %p31 = scmp.eq.s32.totalorder %s14, 1
    %p32 = por %p30, %p31
    %p33 = scmp.ne.s32.totalorder %s22, %s23
    %p34 = scmp.eq.s32.totalorder %s14, 0
    %p35 = por %p33, %p34
    %p36 = scmp.ne.s32.totalorder %s22, %s23
    %p37 = scmp.eq.s32.totalorder %s15, 1
    %p38 = por %p36, %p37
    %p40 = scmp.ne.s32.totalorder %s23, %s39
    %p41 = scmp.eq.s32.totalorder %s15, 0
    %p42 = por %p40, %p41
    %s44 = sadd.s32 %s43, 1
    %p47 = scmp.eq.s32.totalorder %s9, 1
    %p48 = scmp.ne.s32.totalorder %s43, %s45
    %p49 = scmp.eq.s32.totalorder %s9, 0
    %p50 = por %p48, %p49
    %p51 = scmp.ne.s32.totalorder %s43, %s45
    %p52 = scmp.eq.s32.totalorder %s14, 1
    %p53 = por %p51, %p52
    %p54 = scmp.ne.s32.totalorder %s45, %s46
    %p55 = scmp.eq.s32.totalorder %s14, 0
    %p56 = por %p54, %p55
    %p57 = scmp.ne.s32.totalorder %s45, %s46
    %p58 = scmp.eq.s32.totalorder %s15, 1
    %p59 = por %p57, %p58
    %p61 = scmp.ne.s32.totalorder %s46, %s60
    %p62 = scmp.eq.s32.totalorder %s15, 0
    %p63 = por %p61, %p62
    %s65 = sadd.s32 %s64, 1
    %p68 = scmp.eq.s32.totalorder %s9, 1
    %p69 = scmp.ne.s32.totalorder %s64, %s66
    %p70 = scmp.eq.s32.totalorder %s9, 0
    %p71 = por %p69, %p70
    %p72 = scmp.ne.s32.totalorder %s64, %s66
    %p73 = scmp.eq.s32.totalorder %s14, 1
    %p74 = por %p72, %p73
    %p75 = scmp.ne.s32.totalorder %s66, %s67
    %p76 = scmp.eq.s32.totalorder %s14, 0
    %p77 = por %p75, %p76
    %p78 = scmp.ne.s32.totalorder %s66, %s67
    %p79 = scmp.eq.s32.totalorder %s15, 1
    %p80 = por %p78, %p79
    %p82 = scmp.ne.s32.totalorder %s67, %s81
    %p83 = scmp.eq.s32.totalorder %s15, 0
    %p84 = por %p82, %p83
    %s85 = ssub.s32 %s9, %s16
    %p86 = scmp.eq.s32.totalorder %s85, 0
    %s88 = sadd.s32 %s87, 1
    %s89 = scalar_select %p86, %s87, %s88
    %p92 = pneg %p86
    %p93 = scmp.eq.s32.totalorder %s9, 1
    %p94 = por %p92, %p93
    %p95 = scmp.ne.s32.totalorder %s87, %s90
    %p96 = scmp.eq.s32.totalorder %s9, 0
    %p97 = por %p95, %p96
    %p98 = scmp.ne.s32.totalorder %s87, %s90
    %p99 = scmp.eq.s32.totalorder %s14, 1
    %p100 = por %p98, %p99
    %p101 = scmp.ne.s32.totalorder %s90, %s91
    %p102 = scmp.eq.s32.totalorder %s14, 0
    %p103 = por %p101, %p102
    %p104 = scmp.ne.s32.totalorder %s90, %s91
    %p105 = scmp.eq.s32.totalorder %s15, 1
    %p106 = por %p104, %p105
    %p108 = scmp.ne.s32.totalorder %s91, %s107
    %p109 = scmp.eq.s32.totalorder %s15, 0
    %p110 = por %p108, %p109
    %p111 = scmp.le.s32.totalorder 1, %s9
    %p112 = scmp.lt.s32.totalorder %s9, 3
    %p113 = pnand %p111, %p112
    %p114 = pneg %p113
    // Predicated region
    $region9: #{sdc_conv2d_1x1s_3_lt2.1} parent=5 // pred_check
      _
    $region10: #{sdc_conv2d_1x1s_3_lt2.1} parent=5 // pred_check_branch
      %116 = sbr.rel (%p113) target = $region12
    $region11: #{sdc_conv2d_1x1s_3_lt2.1} parent=5 // pred_region
      %s117 = ssub.s32 %s9, 1
      // Predicated region
      $region13: #{sdc_conv2d_1x1s_3_lt2.1} parent=11 // pred_check
        %p118 = pneg %p56
      $region14: #{sdc_conv2d_1x1s_3_lt2.1} parent=11 // pred_check_branch
        %120 = sbr.rel (%p118) target = $region16
      $region15: #{sdc_conv2d_1x1s_3_lt2.1} parent=11 // pred_region
        _
      $region16: #{sdc_conv2d_1x1s_3_lt2.1} parent=11 // pred_fallthru
        _
      // Predicated region
      $region17: #{sdc_conv2d_1x1s_3_lt2.1} parent=11 // pred_check
        %p121 = pneg %p77
      $region18: #{sdc_conv2d_1x1s_3_lt2.1} parent=11 // pred_check_branch
        %123 = sbr.rel (%p121) target = $region20
      $region19: #{sdc_conv2d_1x1s_3_lt2.1} parent=11 // pred_region
        _
      $region20: #{sdc_conv2d_1x1s_3_lt2.1} parent=11 // pred_fallthru
        _
    $region12: #{sdc_conv2d_1x1s_3_lt2.1} parent=5 // pred_fallthru
      _
    %p124 = scmp.lt.s32.totalorder %s9, 2
    // Predicated region
    $region21: #{sdc_conv2d_1x1s_3_lt2.1} parent=5 // pred_check
      %p125 = pneg %p124
    $region22: #{sdc_conv2d_1x1s_3_lt2.1} parent=5 // pred_check_branch
      %127 = sbr.rel (%p125) target = $region24
    $region23: #{sdc_conv2d_1x1s_3_lt2.1} parent=5 // pred_region
      // Predicated region
      $region25: #{sdc_conv2d_1x1s_3_lt2.1} parent=23 // pred_check
        %p128 = pneg %p29
      $region26: #{sdc_conv2d_1x1s_3_lt2.1} parent=23 // pred_check_branch
        %130 = sbr.rel (%p128) target = $region28
      $region27: #{sdc_conv2d_1x1s_3_lt2.1} parent=23 // pred_region
        %p131 = scmp.lt.s32.totalorder %s9, 1
        %s132 = scalar_select %p131, %s9, 1
        %s133 = smul.addr %s132, 2
        %s134 = smul.addr %s133, 4
        %s135 = scalar_lea.vmem %s0, %s134
      $region28: #{sdc_conv2d_1x1s_3_lt2.1} parent=23 // pred_fallthru
        _
    $region24: #{sdc_conv2d_1x1s_3_lt2.1} parent=5 // pred_fallthru
      _
    %p136 = scmp.le.s32.totalorder 1, %s9
    %p137 = scmp.lt.s32.totalorder %s9, 3
    %p138 = pnand %p136, %p137
    %p139 = pneg %p138
    // Predicated region
    $region29: #{sdc_conv2d_1x1s_3_lt2.1} parent=5 // pred_check
      _
    $region30: #{sdc_conv2d_1x1s_3_lt2.1} parent=5 // pred_check_branch
      %141 = sbr.rel (%p138) target = $region32
    $region31: #{sdc_conv2d_1x1s_3_lt2.1} parent=5 // pred_region
      %s142 = ssub.s32 %s9, 1
      %p143 = scmp.lt.s32.totalorder %s14, 1
      %s144 = scalar_select %p143, %s14, 1
      %s145 = smul.addr %s144, 2
      %s146 = smul.addr %s145, 4
      %s147 = scalar_lea.vmem %s0, %s146
      %p148 = pneg %p35
      %p149 = pneg %p32
      %p150 = pneg %p56
      %p151 = pneg %p53
      %p152 = pneg %p77
      %p153 = pneg %p74
      %p154 = pneg %p103
      %p155 = pneg %p100
      %p156 = scmp.lt.s32.totalorder %s14, 1
      %s157 = scalar_select %p156, %s14, 1
      %s158 = smul.addr %s157, 2
      %s159 = smul.addr %s158, 8
      %s160 = scalar_lea.vmem %s3, %s159
      %p161 = scmp.lt.s32.totalorder %s14, 1
      %s162 = scalar_select %p161, %s14, 1
      %s163 = smul.addr %s162, 2
      %s164 = smul.addr %s163, 4
      %s165 = scalar_lea.vmem %s0, %s164
      %p166 = scmp.lt.s32.totalorder %s14, 1
      %s167 = scalar_select %p166, %s14, 1
      %s168 = smul.addr %s167, 2
      %s169 = smul.addr %s168, 8
      %s170 = scalar_lea.vmem %s3, %s169
      %v171 = vld [vmem:[%s165] sm:$0xff]
      %173 = vst [vmem:[#allocation1] ss:$2 sm:$0xff] %v171
      %v174 = vld.sshfl [vmem:[#allocation1] sm:$0xff pattern:$0x75316420]
      %v175 = vld.sshfl [vmem:[#allocation1 + $0x8] sm:$0xff pattern:$0x75316420]
      %178 = vrot.lane.b32.xlu0 %v174, 111
      %v179 = vpop.permute.xlu0 %178
      %180 = vrot.lane.b32.xlu0 %v175, 111
      %v181 = vpop.permute.xlu0 %180
      %v182 = vlaneseq
      %v183 = vand.u32 %v182, 127
      %vm184 = vcmp.lt.s32.totalorder %v183, 111
      %v185 = vsel %vm184, %v179, %v181
      %v186 = vsel %vm184, %v181, %v179
      %v187 = vld [vmem:[%s2] ss:$8 sm:$0x3]
      %v189 = vperm.slane %v187, 0
      %v190 = vperm.slane %v187, 1
      %v193 = vmul.f32 %v185, %v189
      %v194 = vmul.f32 %v186, %v190
      %195 = vst [vmem:[#allocation1] ss:$2 sm:$0xff] %v171
      %v196 = vld.sshfl [vmem:[#allocation1] sm:$0xff pattern:$0x75316420]
      %v197 = vld.sshfl [vmem:[#allocation1 + $0x8] sm:$0xff pattern:$0x75316420]
      %200 = vrot.lane.b32.xlu0 %v196, 112
      %v201 = vpop.permute.xlu0 %200
      %202 = vrot.lane.b32.xlu0 %v197, 112
      %v203 = vpop.permute.xlu0 %202
      %vm204 = vcmp.lt.s32.totalorder %v183, 112
      %v205 = vsel %vm204, %v201, %v203
      %v206 = vsel %vm204, %v203, %v201
      %s207 = scalar_lea.vmem %s2, 1
      %v208 = vld [vmem:[%s207] ss:$8 sm:$0x3]
      %v210 = vperm.slane %v208, 0
      %v211 = vperm.slane %v208, 1
      %v214 = vmul.f32 %v205, %v210
      %v215 = vmul.f32 %v206, %v211
      %216 = vst [vmem:[#allocation1] ss:$2 sm:$0xff] %v171
      %v217 = vld.sshfl [vmem:[#allocation1] sm:$0xff pattern:$0x75316420]
      %v218 = vld.sshfl [vmem:[#allocation1 + $0x8] sm:$0xff pattern:$0x75316420]
      %221 = vrot.lane.b32.xlu0 %v217, 113
      %v222 = vpop.permute.xlu0 %221
      %223 = vrot.lane.b32.xlu0 %v218, 113
      %v224 = vpop.permute.xlu0 %223
      %vm225 = vcmp.lt.s32.totalorder %v183, 113
      %v226 = vsel %vm225, %v222, %v224
      %v227 = vsel %vm225, %v224, %v222
      %s228 = scalar_lea.vmem %s2, 2
      %v229 = vld [vmem:[%s228] ss:$8 sm:$0x3]
      %v231 = vperm.slane %v229, 0
      %v232 = vperm.slane %v229, 1
      %v235 = vmul.f32 %v226, %v231
      %v236 = vmul.f32 %v227, %v232
      %237 = vst [vmem:[#allocation1] ss:$2 sm:$0xff] %v171
      %v238 = vld.sshfl [vmem:[#allocation1] sm:$0xff pattern:$0x75316420]
      %v239 = vld.sshfl [vmem:[#allocation1 + $0x8] sm:$0xff pattern:$0x75316420]
      %242 = vrot.lane.b32.xlu0 %v238, 1
      %v243 = vpop.permute.xlu0 %242
      %244 = vrot.lane.b32.xlu0 %v239, 1
      %v245 = vpop.permute.xlu0 %244
      %vm246 = vcmp.lt.s32.totalorder %v183, 1
      %v247 = vsel %vm246, %v243, %v245
      %v248 = vsel %vm246, %v245, %v243
      %s249 = scalar_lea.vmem %s2, 3
      %v250 = vld [vmem:[%s249] ss:$8 sm:$0x3]
      %v252 = vperm.slane %v250, 0
      %v253 = vperm.slane %v250, 1
      %v256 = vmul.f32 %v248, %v252
      %v257 = vmul.f32 %v247, %v253
      %258 = vst [vmem:[#allocation1] ss:$2 sm:$0xff] %v171
      %v259 = vld.sshfl [vmem:[#allocation1] sm:$0xff pattern:$0x75316420]
      %v260 = vld.sshfl [vmem:[#allocation1 + $0x8] sm:$0xff pattern:$0x75316420]
      %263 = vrot.lane.b32.xlu0 %v259, 17
      %v264 = vpop.permute.xlu0 %263
      %265 = vrot.lane.b32.xlu0 %v260, 17
      %v266 = vpop.permute.xlu0 %265
      %vm267 = vcmp.lt.s32.totalorder %v183, 17
      %v268 = vsel %vm267, %v264, %v266
      %v269 = vsel %vm267, %v266, %v264
      %s270 = scalar_lea.vmem %s2, 4
      %v271 = vld [vmem:[%s270] ss:$8 sm:$0x3]
      %v273 = vperm.slane %v271, 0
      %v274 = vperm.slane %v271, 1
      %v277 = vmul.f32 %v269, %v273
      %v278 = vmul.f32 %v268, %v274
      %vm279 = vcmask 1043456
      %v280 = vsel %vm279, %v193, %v189
      %v281 = vsel %vm279, %v194, %v190
      %v282 = vsel %vm279, %v214, %v210
      %v283 = vsel %vm279, %v215, %v211
      %v284 = vsel %vm279, %v235, %v231
      %v285 = vsel %vm279, %v236, %v232
      %v286 = vsel %vm279, %v256, %v252
      %v287 = vsel %vm279, %v257, %v253
      %v288 = vsel %vm279, %v277, %v273
      %v289 = vsel %vm279, %v278, %v274
      %v290 = vld [vmem:[%s1] sm:$0xff]
      %vm291 = vcmask 326656
      %v293 = vsel %vm291, %v290, 0
      %295 = vmatpush.msra.mxu0 0.0
      %296 = vmatpush.msra.mxu0 0.0
      %297 = vmatpush.msra.mxu0 0.0
      %298 = vmatpush.msra.mxu0 0.0
      %299 = vmatpush.msra.mxu0 0.0
      %300 = vmatpush.msra.mxu0 0.0
      %301 = vmatpush.msra.mxu0 0.0
      %302 = vmatpush.msra.mxu0 0.0
      %303 = vmatpush.msra.mxu0 0.0
      %304 = vmatpush.msra.mxu0 0.0
      %305 = vmatpush.msra.mxu0 0.0
      %306 = vmatpush.msra.mxu0 %v288
      %307 = vmatpush.msra.mxu0 %v286
      %308 = vmatpush.msra.mxu0 %v284
      %309 = vmatpush.msra.mxu0 %v282
      %310 = vmatpush.msra.mxu0 %v280
      %311 = vmatmul.f32.gmra.mxu0 %v293
      %v312 = vpop.f32.mrf.mxu0
      %v313 = vadd.f32 0.0, %v312
      %314 = vdwg.mxu0
      %315 = vmatpush.msra.mxu0 0.0
      %316 = vmatpush.msra.mxu0 0.0
      %317 = vmatpush.msra.mxu0 0.0
      %318 = vmatpush.msra.mxu0 0.0
      %319 = vmatpush.msra.mxu0 0.0
      %320 = vmatpush.msra.mxu0 0.0
      %321 = vmatpush.msra.mxu0 0.0
      %322 = vmatpush.msra.mxu0 0.0
      %323 = vmatpush.msra.mxu0 0.0
      %324 = vmatpush.msra.mxu0 0.0
      %325 = vmatpush.msra.mxu0 0.0
      %326 = vmatpush.msra.mxu0 %v289
      %327 = vmatpush.msra.mxu0 %v287
      %328 = vmatpush.msra.mxu0 %v285
      %329 = vmatpush.msra.mxu0 %v283
      %330 = vmatpush.msra.mxu0 %v281
      %331 = vmatmul.f32.gmra.mxu0 %v293
      %v332 = vpop.f32.mrf.mxu0
      %v333 = vadd.f32 0.0, %v332
      %334 = vdwg.mxu0
      %335 = vst [vmem:[%s170] sm:$0xff] %v313
      %336 = vst [vmem:[%s170 + $0x8] sm:$0xff] %v333
      %p337 = scmp.lt.s32.totalorder %s14, 1
      %s338 = scalar_select %p337, %s14, 1
      %s339 = smul.addr %s338, 2
      %s340 = smul.addr %s339, 8
      %s341 = scalar_lea.vmem %s3, %s340
      // Predicated region
      $region33: #{sdc_conv2d_1x1s_3_lt2.1} parent=31 // pred_check
        %p342 = pneg %p100
      $region34: #{sdc_conv2d_1x1s_3_lt2.1} parent=31 // pred_check_branch
        %344 = sbr.rel (%p342) target = $region36
      $region35: #{sdc_conv2d_1x1s_3_lt2.1} parent=31 // pred_region
        _
      $region36: #{sdc_conv2d_1x1s_3_lt2.1} parent=31 // pred_fallthru
        _
    $region32: #{sdc_conv2d_1x1s_3_lt2.1} parent=5 // pred_fallthru
      _
    %p345 = scmp.le.s32.totalorder 2, %s9
    // Predicated region
    $region37: #{sdc_conv2d_1x1s_3_lt2.1} parent=5 // pred_check
      %p346 = pneg %p345
    $region38: #{sdc_conv2d_1x1s_3_lt2.1} parent=5 // pred_check_branch
      %348 = sbr.rel (%p346) target = $region40
    $region39: #{sdc_conv2d_1x1s_3_lt2.1} parent=5 // pred_region
      %s349 = ssub.s32 %s9, 2
      // Predicated region
      $region41: #{sdc_conv2d_1x1s_3_lt2.1} parent=39 // pred_check
        %p350 = pneg %p106
      $region42: #{sdc_conv2d_1x1s_3_lt2.1} parent=39 // pred_check_branch
        %352 = sbr.rel (%p350) target = $region44
      $region43: #{sdc_conv2d_1x1s_3_lt2.1} parent=39 // pred_region
        %p353 = scmp.lt.s32.totalorder %s15, 1
        %s354 = scalar_select %p353, %s15, 1
        %s355 = smul.addr %s354, 2
        %s356 = smul.addr %s355, 8
        %s357 = scalar_lea.vmem %s3, %s356
      $region44: #{sdc_conv2d_1x1s_3_lt2.1} parent=39 // pred_fallthru
        _
    $region40: #{sdc_conv2d_1x1s_3_lt2.1} parent=5 // pred_fallthru
      _
  $region6: #{sdc_conv2d_1x1s_3_lt2.1} parent=0 // loop_footer
    %s13 = sadd.s32 1, %s9
  $region7: #{sdc_conv2d_1x1s_3_lt2.1} parent=0 // loop_footer_branch
    %8 = sbr.rel target = $region3
  $region8: #{sdc_conv2d_1x1s_3_lt2.1} parent=0 // loop_exit
    _

</llo_original>
